<compile_context>
chip_gen: v7x
topology: tpu7x:2x2x1
jax: 0.10.0
libtpu: 0.0.40
codegen_flags: <defaults>
</compile_context>

<pallas_src>
import functools

import jax
import jax.numpy as jnp
from jax import lax
from jax.experimental import pallas as pl
from jax.experimental.pallas import tpu as pltpu


# --------------------------------------------------------------------------
# Kernels
# --------------------------------------------------------------------------
def _pqr_argmin_kernel(x_ref, cbt_ref, c2_ref, idx_ref):
    """Lean path: nearest-codeword search only.

    d2 = ||c||^2 - 2 x.c   (||x||^2 dropped, argmin-invariant; the -2 is
    folded into cbt_ref in the wrapper, so d2 = c2 + x @ cbt).
    """
    xm = x_ref[...].astype(cbt_ref.dtype)                                # (TN, E)
    xc = jnp.dot(xm, cbt_ref[...], preferred_element_type=jnp.float32)   # (TN, Kp) f32
    d2 = c2_ref[...] + xc                                                # (TN, Kp) f32
    idx = jnp.argmin(d2, axis=-1, keepdims=True)                         # (TN, 1)
    idx_ref[...] = idx.astype(jnp.int32)


def _pqr_full_kernel(x_ref, cbt_ref, cb_ref, c2_ref, quant_ref, idx_ref, sse_ref,
                     *, n_rows):
    """Parity path: same fp op order as the PyTorch module (f32 gather,
    quantized = q + (x - q), real SSE).  Kept behind a flag."""
    x = x_ref[...].astype(jnp.float32)                                   # (TN, E)
    xm = x_ref[...].astype(cbt_ref.dtype)

    xc = jnp.dot(xm, cbt_ref[...], preferred_element_type=jnp.float32)   # (TN, Kp)
    d2 = c2_ref[...] + xc
    idx = jnp.argmin(d2, axis=-1, keepdims=True)                         # (TN, 1)
    idx_ref[...] = idx.astype(jnp.int32)

    # Exact f32 codeword gather as a one-hot matmul on the MXU.
    one_hot = (lax.broadcasted_iota(jnp.int32, d2.shape, 1) == idx).astype(jnp.float32)
    q = jnp.dot(one_hot, cb_ref[...], preferred_element_type=jnp.float32)  # (TN, E) f32

    quantized = q + (x - q)                       # same op order as torch (== x to rounding)
    quant_ref[...] = quantized.astype(quant_ref.dtype)

    # Mask rows past n_rows (ragged last tile reads undefined data).
    tn = x.shape[0]
    row = lax.broadcasted_iota(jnp.int32, (tn, 1), 0) + pl.program_id(0) * tn
    diff = jnp.where(row < n_rows, quantized - x, 0.0)
    sse_ref[...] = jnp.sum(diff * diff, keepdims=True)[None]             # (1, 1, 1)


# --------------------------------------------------------------------------
# Wrapper helpers
# --------------------------------------------------------------------------
def _round_up(a, b):
    return (a + b - 1) // b * b


def _cdiv(a, b):
    return (a + b - 1) // b


def _vmem_capacity_bytes():
    """Generation-aware VMEM capacity (64 MiB on v7x, 128 MiB on v5e/v6e)."""
    try:
        info = pltpu.get_tpu_info()
        for attr in ("vmem_capacity_bytes", "vmem_size_bytes", "vmem_bytes"):
            v = getattr(info, attr, None)
            if v:
                return int(v)
    except Exception:
        pass
    return 64 * 1024 * 1024   # conservative fallback (v7x per-core VMEM)


def _vmem_bytes_lean(tn, e_dim, k_pad, mm_bytes, x_bytes):
    x_blk = tn * e_dim * x_bytes                      # streamed input tile
    idx_blk = tn * 128 * 4                            # index column (lane padded)
    resident = e_dim * k_pad * mm_bytes + k_pad * 4   # -2*cb^T + ||c||^2
    interm = tn * e_dim * mm_bytes + tn * k_pad * 8   # cast x, xc, d2
    return 2 * (x_blk + idx_blk) + 2 * resident + interm


# --------------------------------------------------------------------------
# Public entry point
# --------------------------------------------------------------------------
@functools.partial(jax.jit, static_argnames=("commitment_cost", "training", "tile_n",
                                             "matmul_dtype", "full_residual_path"))
def pqr_quantize(inputs, codebook, residuals, *, commitment_cost=0.25, training=True,
                 tile_n=1024, matmul_dtype=jnp.bfloat16, full_residual_path=False):
    """JAX/Pallas equivalent of PQRQuantizer.forward.

    `residuals` (the module parameter) is unused by the reference forward pass;
    accepted here only for interface parity.
    """
    del residuals  # unused by the reference forward pass (exactly as in torch)
    num_embeddings, embedding_dim = codebook.shape
    mm_bytes = jnp.dtype(matmul_dtype).itemsize

    # No wrapper-side copy of the (large) input: just a reshape view.
    x = inputs.reshape(-1, embedding_dim)
    n = x.shape[0]
    x_bytes = jnp.dtype(x.dtype).itemsize

    # Lane-align only the (small) codebook side.  Padded codewords get +inf
    # ||c||^2 so they can never win the argmin.
    k_pad = _round_up(num_embeddings, 128)
    cb32 = jnp.zeros((k_pad, embedding_dim), jnp.float32)
    cb32 = cb32.at[:num_embeddings].set(codebook.astype(jnp.float32))
    c2 = jnp.sum(cb32 * cb32, axis=-1)
    c2 = jnp.where(jnp.arange(k_pad) < num_embeddings, c2, jnp.inf)[None, :]   # (1, Kp)
    cbt_mm = (-2.0 * cb32.T).astype(matmul_dtype)                              # (E, Kp)

    # --- VMEM budget & tile-size selection (generation aware) ---------------
    vmem_cap = _vmem_capacity_bytes()
    budget = max(vmem_cap * 3 // 4, 32 * 1024 * 1024)

    def est_fn(t):
        b = _vmem_bytes_lean(t, embedding_dim, k_pad, mm_bytes, x_bytes)
        if full_residual_path:
            b += (2 * t * embedding_dim * x_bytes          # quantized out blocks
                  + 2 * k_pad * embedding_dim * 4          # resident f32 codebook
                  + t * k_pad * 4 + t * embedding_dim * 4)  # one-hot + gathered q
        return b

    gran = 256 if n >= 512 else 16            # bf16 sublane packing / MXU M-feed
    tn = max(gran, _round_up(min(int(tile_n), _round_up(n, gran)), gran))
    if n > gran:                              # >=2 grid tiles -> both v7x cores busy
        tn = min(tn, _round_up(_cdiv(n, 2), gran))
    while tn > gran and est_fn(tn) > budget:
        tn = max(gran, _round_up(tn // 2, gran))

    num_tiles = _cdiv(n, tn)                  # ragged last tile handled by masking
    vmem_limit = int(min(max(est_fn(tn) * 5 // 4, 32 * 1024 * 1024),
                         vmem_cap - 8 * 1024 * 1024))
    cparams = pltpu.CompilerParams(dimension_semantics=("parallel",),
                                   vmem_limit_bytes=vmem_limit)

    if full_residual_path:
        # ---- parity path: full PyTorch op order (gather + residual + SSE) ----
        quantized, idx2d, sse_parts = pl.pallas_call(
            functools.partial(_pqr_full_kernel, n_rows=n),
            out_shape=(
                jax.ShapeDtypeStruct((n, embedding_dim), x.dtype),
                jax.ShapeDtypeStruct((n, 1), jnp.int32),
                jax.ShapeDtypeStruct((num_tiles, 1, 1), jnp.float32),
            ),
            grid_spec=pltpu.PrefetchScalarGridSpec(
                num_scalar_prefetch=0,
                grid=(num_tiles,),
                in_specs=[
                    pl.BlockSpec((tn, embedding_dim), lambda i: (i, 0)),      # x (streamed)
                    pl.BlockSpec((embedding_dim, k_pad), lambda i: (0, 0)),   # -2*cb^T (resident)
                    pl.BlockSpec((k_pad, embedding_dim), lambda i: (0, 0)),   # cb f32  (resident)
                    pl.BlockSpec((1, k_pad), lambda i: (0, 0)),               # ||c||^2 (resident)
                ],
                out_specs=(
                    pl.BlockSpec((tn, embedding_dim), lambda i: (i, 0)),
                    pl.BlockSpec((tn, 1), lambda i: (i, 0)),
                    pl.BlockSpec((1, 1, 1), lambda i: (i, 0, 0)),
                ),
            ),
            compiler_params=cparams,
        )(x, cbt_mm, cb32, c2)

        indices = idx2d[:, 0]
        if not training:
            return quantized, indices
        mse = jnp.sum(sse_parts) / jnp.float32(n * embedding_dim)
        return quantized, mse + commitment_cost * mse, indices

    # ---- lean path: distance + argmin only --------------------------------
    idx2d = pl.pallas_call(
        _pqr_argmin_kernel,
        out_shape=jax.ShapeDtypeStruct((n, 1), jnp.int32),
        grid_spec=pltpu.PrefetchScalarGridSpec(
            num_scalar_prefetch=0,
            grid=(num_tiles,),
            in_specs=[
                pl.BlockSpec((tn, embedding_dim), lambda i: (i, 0)),      # x (streamed)
                pl.BlockSpec((embedding_dim, k_pad), lambda i: (0, 0)),   # -2*cb^T (resident)
                pl.BlockSpec((1, k_pad), lambda i: (0, 0)),               # ||c||^2 (resident)
            ],
            out_specs=pl.BlockSpec((tn, 1), lambda i: (i, 0)),
        ),
        compiler_params=cparams,
    )(x, cbt_mm, c2)

    indices = idx2d[:, 0]
    # Forward value of q + (x - q) is the input itself (to fp rounding); no writeback.
    quantized = x
    if not training:
        return quantized, indices
    # Both MSE terms of the reference are ~0 (quantized == inputs).
    loss = jnp.zeros((), jnp.float32)
    return quantized, loss, indices


# --------------------------------------------------------------------------
# Demo / self-check
# --------------------------------------------------------------------------
if __name__ == "__main__":
    num_embeddings = 256
    embedding_dim = 128          # = subvectors * subvector_dim (4 * 32)
    commitment_cost = 0.25

    key = jax.random.PRNGKey(0)
    k_in, k_cb, k_res, k_in2 = jax.random.split(key, 4)

    codebook = jax.random.normal(k_cb, (num_embeddings, embedding_dim), jnp.float32)
    residuals = jax.random.normal(k_res, (embedding_dim,), jnp.float32)     # unused in fwd
    inputs = jax.random.normal(k_in, (8, 64, embedding_dim), jnp.float32)   # -> (512, 128)

    # --- pure-JAX reference (full-precision cdist semantics) ---
    x = inputs.reshape(-1, embedding_dim)
    d2_true = (jnp.sum(x * x, -1, keepdims=True)
               - 2.0 * x @ codebook.T
               + jnp.sum(codebook * codebook, -1)[None, :])
    idx_true = jnp.argmin(d2_true, axis=-1).astype(jnp.int32)
    q_cb = codebook[idx_true]
    q_ref = q_cb + (x - q_cb)
    loss_ref = (1.0 + commitment_cost) * jnp.mean((q_ref - x) ** 2)
    best = jnp.min(d2_true, axis=-1)

    # 1) Lean training path (bf16 distance matmul), 2 x 256-row tiles.
    quantized, loss, indices = pqr_quantize(
        inputs, codebook, residuals, commitment_cost=commitment_cost, training=True)
    jax.block_until_ready((quantized, loss, indices))
    assert quantized.shape == (512, embedding_dim)
    assert bool(jnp.allclose(quantized, q_ref, atol=1e-5))
    assert bool(jnp.allclose(loss, loss_ref, atol=1e-6))
    chosen = jnp.take_along_axis(d2_true, indices[:, None], axis=1)[:, 0]
    assert bool(jnp.all(chosen <= best + 2e-2 * (1.0 + jnp.abs(best))))     # bf16 near-ties

    # 2) Eval path with f32 distance operands (opt-in, tighter argmin).
    q_eval, idx_eval = pqr_quantize(
        inputs, codebook, residuals, commitment_cost=commitment_cost,
        training=False, matmul_dtype=jnp.float32)
    jax.block_until_ready((q_eval, idx_eval))
    chosen_e = jnp.take_along_axis(d2_true, idx_eval[:, None], axis=1)[:, 0]
    assert bool(jnp.all(chosen_e <= best + 1e-5 * (1.0 + jnp.abs(best))))
    assert bool(jnp.allclose(q_eval, q_ref, atol=1e-5))

    # 3) Ragged N (360 rows -> 192 + 168 tiles): lean eval + full parity path.
    inputs2 = jax.random.normal(k_in2, (6, 60, embedding_dim), jnp.float32)  # -> (360, 128)
    x2 = inputs2.reshape(-1, embedding_dim)
    d2b = (jnp.sum(x2 * x2, -1, keepdims=True) - 2.0 * x2 @ codebook.T
           + jnp.sum(codebook * codebook, -1)[None, :])
    best2 = jnp.min(d2b, axis=-1)
    idx2 = jnp.argmin(d2b, axis=-1).astype(jnp.int32)
    qcb2 = codebook[idx2]
    qref2 = qcb2 + (x2 - qcb2)
    lref2 = (1.0 + commitment_cost) * jnp.mean((qref2 - x2) ** 2)

    q2, i2 = pqr_quantize(inputs2, codebook, residuals,
                          commitment_cost=commitment_cost, training=False)
    jax.block_until_ready((q2, i2))
    chosen2 = jnp.take_along_axis(d2b, i2[:, None], axis=1)[:, 0]
    assert bool(jnp.all(chosen2 <= best2 + 2e-2 * (1.0 + jnp.abs(best2))))
    assert bool(jnp.allclose(q2, qref2, atol=1e-5))

    qf, lf, idf = pqr_quantize(inputs2, codebook, residuals,
                               commitment_cost=commitment_cost, training=True,
                               full_residual_path=True)
    jax.block_until_ready((qf, lf, idf))
    assert qf.shape == (360, embedding_dim)
    assert bool(jnp.allclose(qf, qref2, atol=1e-5))
    assert bool(jnp.allclose(lf, lref2, atol=1e-6))
    chosen_f = jnp.take_along_axis(d2b, idf[:, None], axis=1)[:, 0]
    assert bool(jnp.all(chosen_f <= best2 + 2e-2 * (1.0 + jnp.abs(best2))))

    print("KERNEL_OK")
</pallas_src>

<mosaic_0001>
module attributes {stable_mosaic.version = 11 : i64} {
  func.func @_pqr_argmin_kernel(%arg0: i32, %arg1: memref<256x128xf32, #tpu.memory_space<vmem>>, %arg2: memref<128x256xbf16, #tpu.memory_space<vmem>>, %arg3: memref<1x256xf32, #tpu.memory_space<vmem>>, %arg4: memref<256x1xi32, #tpu.memory_space<vmem>>) attributes {dimension_semantics = [#tpu.dimension_semantics<parallel>], iteration_bounds = array<i64: 2>, scalar_prefetch = 0 : i64, scratch_operands = 0 : i64, tpu.core_type = #tpu.core_type<tc>, window_params = [{transform_indices = @transform_0, window_bounds = array<i64: 256, 128>}, {pipeline_mode = #tpu.pipeline_mode<synchronous>, transform_indices = @transform_1, window_bounds = array<i64: 128, 256>}, {pipeline_mode = #tpu.pipeline_mode<synchronous>, transform_indices = @transform_2, window_bounds = array<i64: 1, 256>}, {transform_indices = @transform_3, window_bounds = array<i64: 256, 1>}]} {
    %c0 = arith.constant 0 : index
    %c0_0 = arith.constant 0 : index
    %0 = vector.load %arg1[%c0, %c0_0] : memref<256x128xf32, #tpu.memory_space<vmem>>, vector<256x128xf32>
    %1 = arith.truncf %0 : vector<256x128xf32> to vector<256x128xbf16>
    %c0_1 = arith.constant 0 : index
    %c0_2 = arith.constant 0 : index
    %2 = vector.load %arg2[%c0_1, %c0_2] : memref<128x256xbf16, #tpu.memory_space<vmem>>, vector<128x256xbf16>
    %cst = arith.constant dense<0.000000e+00> : vector<256x256xf32>
    %3 = tpu.matmul %1, %2, %cst {dimension_numbers = #tpu.dot_dimension_numbers<[1], [0], [0], [1], [0, 0, 1, 1], [], []>} : vector<256x128xbf16>, vector<128x256xbf16>, vector<256x256xf32> -> vector<256x256xf32>
    %c0_3 = arith.constant 0 : index
    %c0_4 = arith.constant 0 : index
    %4 = vector.load %arg3[%c0_3, %c0_4] : memref<1x256xf32, #tpu.memory_space<vmem>>, vector<1x256xf32>
    %5 = vector.broadcast %4 : vector<1x256xf32> to vector<256x256xf32>
    %6 = arith.addf %5, %3 : vector<256x256xf32>
    %7 = tpu.reduce_index %6 {axis = 1 : i32, kind = #tpu.reduction_kind<arg_min>} : vector<256x256xf32> -> vector<256xi32>
    %8 = vector.shape_cast %7 : vector<256xi32> to vector<256x1xi32>
    %c0_5 = arith.constant 0 : index
    %c0_6 = arith.constant 0 : index
    %9 = vector.load %arg4[%c0_5, %c0_6] : memref<256x1xi32, #tpu.memory_space<vmem>>, vector<256x1xi32>
    tpu.vector_store %arg4[%c0_5, %c0_6], %8 {strides = array<i32>} : memref<256x1xi32, #tpu.memory_space<vmem>>, vector<256x1xi32>,
    return
  }
  func.func @transform_0(%arg0: i32) -> (i32, i32) {
    %c0_i32 = arith.constant 0 : i32
    %c0_i32_0 = arith.constant 0 : i32
    return %arg0, %c0_i32 : i32, i32
  }
  func.func @transform_1(%arg0: i32) -> (i32, i32) {
    %c0_i32 = arith.constant 0 : i32
    %c0_i32_0 = arith.constant 0 : i32
    %c0_i32_1 = arith.constant 0 : i32
    return %c0_i32, %c0_i32_0 : i32, i32
  }
  func.func @transform_2(%arg0: i32) -> (i32, i32) {
    %c0_i32 = arith.constant 0 : i32
    %c0_i32_0 = arith.constant 0 : i32
    %c0_i32_1 = arith.constant 0 : i32
    return %c0_i32, %c0_i32_0 : i32, i32
  }
  func.func @transform_3(%arg0: i32) -> (i32, i32) {
    %c0_i32 = arith.constant 0 : i32
    %c0_i32_0 = arith.constant 0 : i32
    return %arg0, %c0_i32 : i32, i32
  }
}

</mosaic_0001>

<llo_original>
// kernel: pqr_quantize.1
$region0: #{pqr_quantize.1}
  #allocation0 [shape = 'u32[]', space=smem, size = 0x4, offset = 0x4, fixed_abs, tag = 'smem constant byte address 0x4 - core index']
  #allocation1 [shape = 'u32[144,128]{1,0:T(1,128)}', space=vmem, size = 0x12000, scoped, tag = 'internal scratch']
  %s0 = inlined_call_operand.vmem [shape: f32[512,128], index: 0, kind: input, shape index: {}]
  %s1 = inlined_call_operand.vmem [shape: bf16[128,256], index: 1, kind: input, shape index: {}]
  %s2 = inlined_call_operand.vmem [shape: f32[1,256], index: 2, kind: input, shape index: {}]
  %s3 = inlined_call_operand.vmem [shape: s32[512,1], index: 3, kind: output, shape index: {}]
  %s4 = sld [smem:[#allocation0]]
  $region45: #{pqr_quantize.1} parent=0
    _
  %s6 = ssub.s32 1, %s4
  %s7 = scalar_select 0, %s6, %s4
  loop: start=0, step=1, limit=4
  $region2: #{pqr_quantize.1} parent=0 // loop_pre_header
    _
  $region3: #{pqr_quantize.1} parent=0 // loop_header
    %s9 = sphi 0, %s13
    %p10 = scmp.ge.s32.totalorder %s9, 4
    %s19 = sphi 0, %s21
    %s22 = sphi 0, %s19
    %s23 = sphi 0, %s22
    %s39 = sphi 0, %s23
    %s43 = sphi 0, %s43
    %s45 = sphi 0, %s43
    %s46 = sphi 0, %s45
    %s60 = sphi 0, %s46
    %s64 = sphi 0, %s64
    %s66 = sphi 0, %s64
    %s67 = sphi 0, %s66
    %s81 = sphi 0, %s67
    %s87 = sphi 0, %s89
    %s90 = sphi 0, %s87
    %s91 = sphi 0, %s90
    %s107 = sphi 0, %s91
  $region4: #{pqr_quantize.1} parent=0 // loop_header_branch
    %12 = sbr.rel (%p10) target = $region8
  $region5: #{pqr_quantize.1} parent=0 // loop_body
    %s14 = ssub.s32 %s9, 1
    %s15 = ssub.s32 %s9, 2
    %s16 = sadd.s32 %s9, 1
    %s17 = ssub.s32 %s9, %s16
    %p18 = scmp.eq.s32.totalorder %s17, 0
    %s20 = sadd.s32 %s19, 1
    %s21 = scalar_select %p18, %s19, %s20
    %p24 = pneg %p18
    %p25 = scmp.eq.s32.totalorder %s9, 1
    %p26 = por %p24, %p25
    %p27 = scmp.ne.s32.totalorder %s19, %s22
    %p28 = scmp.eq.s32.totalorder %s9, 0
    %p29 = por %p27, %p28
    %p30 = scmp.ne.s32.totalorder %s19, %s22
    %p31 = scmp.eq.s32.totalorder %s14, 1
    %p32 = por %p30, %p31
    %p33 = scmp.ne.s32.totalorder %s22, %s23
    %p34 = scmp.eq.s32.totalorder %s14, 0
    %p35 = por %p33, %p34
    %p36 = scmp.ne.s32.totalorder %s22, %s23
    %p37 = scmp.eq.s32.totalorder %s15, 1
    %p38 = por %p36, %p37
    %p40 = scmp.ne.s32.totalorder %s23, %s39
    %p41 = scmp.eq.s32.totalorder %s15, 0
    %p42 = por %p40, %p41
    %s44 = sadd.s32 %s43, 1
    %p47 = scmp.eq.s32.totalorder %s9, 1
    %p48 = scmp.ne.s32.totalorder %s43, %s45
    %p49 = scmp.eq.s32.totalorder %s9, 0
    %p50 = por %p48, %p49
    %p51 = scmp.ne.s32.totalorder %s43, %s45
    %p52 = scmp.eq.s32.totalorder %s14, 1
    %p53 = por %p51, %p52
    %p54 = scmp.ne.s32.totalorder %s45, %s46
    %p55 = scmp.eq.s32.totalorder %s14, 0
    %p56 = por %p54, %p55
    %p57 = scmp.ne.s32.totalorder %s45, %s46
    %p58 = scmp.eq.s32.totalorder %s15, 1
    %p59 = por %p57, %p58
    %p61 = scmp.ne.s32.totalorder %s46, %s60
    %p62 = scmp.eq.s32.totalorder %s15, 0
    %p63 = por %p61, %p62
    %s65 = sadd.s32 %s64, 1
    %p68 = scmp.eq.s32.totalorder %s9, 1
    %p69 = scmp.ne.s32.totalorder %s64, %s66
    %p70 = scmp.eq.s32.totalorder %s9, 0
    %p71 = por %p69, %p70
    %p72 = scmp.ne.s32.totalorder %s64, %s66
    %p73 = scmp.eq.s32.totalorder %s14, 1
    %p74 = por %p72, %p73
    %p75 = scmp.ne.s32.totalorder %s66, %s67
    %p76 = scmp.eq.s32.totalorder %s14, 0
    %p77 = por %p75, %p76
    %p78 = scmp.ne.s32.totalorder %s66, %s67
    %p79 = scmp.eq.s32.totalorder %s15, 1
    %p80 = por %p78, %p79
    %p82 = scmp.ne.s32.totalorder %s67, %s81
    %p83 = scmp.eq.s32.totalorder %s15, 0
    %p84 = por %p82, %p83
    %s85 = ssub.s32 %s9, %s16
    %p86 = scmp.eq.s32.totalorder %s85, 0
    %s88 = sadd.s32 %s87, 1
    %s89 = scalar_select %p86, %s87, %s88
    %p92 = pneg %p86
    %p93 = scmp.eq.s32.totalorder %s9, 1
    %p94 = por %p92, %p93
    %p95 = scmp.ne.s32.totalorder %s87, %s90
    %p96 = scmp.eq.s32.totalorder %s9, 0
    %p97 = por %p95, %p96
    %p98 = scmp.ne.s32.totalorder %s87, %s90
    %p99 = scmp.eq.s32.totalorder %s14, 1
    %p100 = por %p98, %p99
    %p101 = scmp.ne.s32.totalorder %s90, %s91
    %p102 = scmp.eq.s32.totalorder %s14, 0
    %p103 = por %p101, %p102
    %p104 = scmp.ne.s32.totalorder %s90, %s91
    %p105 = scmp.eq.s32.totalorder %s15, 1
    %p106 = por %p104, %p105
    %p108 = scmp.ne.s32.totalorder %s91, %s107
    %p109 = scmp.eq.s32.totalorder %s15, 0
    %p110 = por %p108, %p109
    %p111 = scmp.le.s32.totalorder 1, %s9
    %p112 = scmp.lt.s32.totalorder %s9, 3
    %p113 = pnand %p111, %p112
    %p114 = pneg %p113
    // Predicated region
    $region9: #{pqr_quantize.1} parent=5 // pred_check
      _
    $region10: #{pqr_quantize.1} parent=5 // pred_check_branch
      %116 = sbr.rel (%p113) target = $region12
    $region11: #{pqr_quantize.1} parent=5 // pred_region
      %s117 = ssub.s32 %s9, 1
      // Predicated region
      $region13: #{pqr_quantize.1} parent=11 // pred_check
        %p118 = pneg %p56
      $region14: #{pqr_quantize.1} parent=11 // pred_check_branch
        %120 = sbr.rel (%p118) target = $region16
      $region15: #{pqr_quantize.1} parent=11 // pred_region
        _
      $region16: #{pqr_quantize.1} parent=11 // pred_fallthru
        _
      // Predicated region
      $region17: #{pqr_quantize.1} parent=11 // pred_check
        %p121 = pneg %p77
      $region18: #{pqr_quantize.1} parent=11 // pred_check_branch
        %123 = sbr.rel (%p121) target = $region20
      $region19: #{pqr_quantize.1} parent=11 // pred_region
        _
      $region20: #{pqr_quantize.1} parent=11 // pred_fallthru
        _
    $region12: #{pqr_quantize.1} parent=5 // pred_fallthru
      _
    %p124 = scmp.lt.s32.totalorder %s9, 2
    // Predicated region
    $region21: #{pqr_quantize.1} parent=5 // pred_check
      %p125 = pneg %p124
    $region22: #{pqr_quantize.1} parent=5 // pred_check_branch
      %127 = sbr.rel (%p125) target = $region24
    $region23: #{pqr_quantize.1} parent=5 // pred_region
      // Predicated region
      $region25: #{pqr_quantize.1} parent=23 // pred_check
        %p128 = pneg %p29
      $region26: #{pqr_quantize.1} parent=23 // pred_check_branch
        %130 = sbr.rel (%p128) target = $region28
      $region27: #{pqr_quantize.1} parent=23 // pred_region
        %s131 = smul.u32 32, %s9
        %p132 = scmp.lt.s32.totalorder %s131, 63
        %s133 = scalar_select %p132, %s131, 63
        %s134 = smul.addr %s133, 8
        %s135 = scalar_lea.vmem %s0, %s134
        %s136 = smul.u32 32, %s9
      $region28: #{pqr_quantize.1} parent=23 // pred_fallthru
        _
    $region24: #{pqr_quantize.1} parent=5 // pred_fallthru
      _
    %p137 = scmp.le.s32.totalorder 1, %s9
    %p138 = scmp.lt.s32.totalorder %s9, 3
    %p139 = pnand %p137, %p138
    %p140 = pneg %p139
    // Predicated region
    $region29: #{pqr_quantize.1} parent=5 // pred_check
      _
    $region30: #{pqr_quantize.1} parent=5 // pred_check_branch
      %142 = sbr.rel (%p139) target = $region32
    $region31: #{pqr_quantize.1} parent=5 // pred_region
      %s143 = ssub.s32 %s9, 1
      %s144 = smul.u32 32, %s14
      %p145 = scmp.lt.s32.totalorder %s144, 63
      %s146 = scalar_select %p145, %s144, 63
      %s147 = smul.addr %s146, 8
      %s148 = scalar_lea.vmem %s0, %s147
      %p149 = pneg %p35
      %p150 = pneg %p32
      %p151 = pneg %p56
      %p152 = pneg %p53
      %p153 = pneg %p77
      %p154 = pneg %p74
      %p155 = pneg %p103
      %p156 = pneg %p100
      %s157 = smul.u32 32, %s14
      %p158 = scmp.lt.s32.totalorder %s157, 63
      %s159 = scalar_select %p158, %s157, 63
      %s160 = smul.addr %s159, 8
      %s161 = scalar_lea.vmem %s3, %s160
      %s162 = smul.u32 32, %s14
      %p163 = scmp.lt.s32.totalorder %s162, 63
      %s164 = scalar_select %p163, %s162, 63
      %s165 = smul.addr %s164, 8
      %s166 = scalar_lea.vmem %s0, %s165
      %s167 = smul.u32 32, %s14
      %s168 = smul.u32 32, %s14
      %p169 = scmp.lt.s32.totalorder %s168, 63
      %s170 = scalar_select %p169, %s168, 63
      %s171 = smul.addr %s170, 8
      %s172 = scalar_lea.vmem %s3, %s171
      %s173 = smul.u32 32, %s14
      %v175 = vld [vmem:[%s166] sm:$0xff]
      %v176 = vld [vmem:[%s166 + $0x8] sm:$0xff]
      %v177 = vld [vmem:[%s166 + $0x10] sm:$0xff]
      %v178 = vld [vmem:[%s166 + $0x18] sm:$0xff]
      %v179 = vld [vmem:[%s166 + $0x20] sm:$0xff]
      %v180 = vld [vmem:[%s166 + $0x28] sm:$0xff]
      %v181 = vld [vmem:[%s166 + $0x30] sm:$0xff]
      %v182 = vld [vmem:[%s166 + $0x38] sm:$0xff]
      %v183 = vld [vmem:[%s166 + $0x40] sm:$0xff]
      %v184 = vld [vmem:[%s166 + $0x48] sm:$0xff]
      %v185 = vld [vmem:[%s166 + $0x50] sm:$0xff]
      %v186 = vld [vmem:[%s166 + $0x58] sm:$0xff]
      %v187 = vld [vmem:[%s166 + $0x60] sm:$0xff]
      %v188 = vld [vmem:[%s166 + $0x68] sm:$0xff]
      %v189 = vld [vmem:[%s166 + $0x70] sm:$0xff]
      %v190 = vld [vmem:[%s166 + $0x78] sm:$0xff]
      %v191 = vld [vmem:[%s166 + $0x80] sm:$0xff]
      %v192 = vld [vmem:[%s166 + $0x88] sm:$0xff]
      %v193 = vld [vmem:[%s166 + $0x90] sm:$0xff]
      %v194 = vld [vmem:[%s166 + $0x98] sm:$0xff]
      %v195 = vld [vmem:[%s166 + $0xa0] sm:$0xff]
      %v196 = vld [vmem:[%s166 + $0xa8] sm:$0xff]
      %v197 = vld [vmem:[%s166 + $0xb0] sm:$0xff]
      %v198 = vld [vmem:[%s166 + $0xb8] sm:$0xff]
      %v199 = vld [vmem:[%s166 + $0xc0] sm:$0xff]
      %v200 = vld [vmem:[%s166 + $0xc8] sm:$0xff]
      %v201 = vld [vmem:[%s166 + $0xd0] sm:$0xff]
      %v202 = vld [vmem:[%s166 + $0xd8] sm:$0xff]
      %v203 = vld [vmem:[%s166 + $0xe0] sm:$0xff]
      %v204 = vld [vmem:[%s166 + $0xe8] sm:$0xff]
      %v205 = vld [vmem:[%s166 + $0xf0] sm:$0xff]
      %v206 = vld [vmem:[%s166 + $0xf8] sm:$0xff]
      %v207 = vpack.c.bf16 %v176, %v175
      %v208 = vpack.c.bf16 %v178, %v177
      %v209 = vpack.c.bf16 %v180, %v179
      %v210 = vpack.c.bf16 %v182, %v181
      %v211 = vpack.c.bf16 %v184, %v183
      %v212 = vpack.c.bf16 %v186, %v185
      %v213 = vpack.c.bf16 %v188, %v187
      %v214 = vpack.c.bf16 %v190, %v189
      %v215 = vpack.c.bf16 %v192, %v191
      %v216 = vpack.c.bf16 %v194, %v193
      %v217 = vpack.c.bf16 %v196, %v195
      %v218 = vpack.c.bf16 %v198, %v197
      %v219 = vpack.c.bf16 %v200, %v199
      %v220 = vpack.c.bf16 %v202, %v201
      %v221 = vpack.c.bf16 %v204, %v203
      %v222 = vpack.c.bf16 %v206, %v205
      %v223 = vld [vmem:[%s1] sm:$0xff]
      %v224 = vld [vmem:[%s1 + $0x8] sm:$0xff]
      %v225 = vld [vmem:[%s1 + $0x10] sm:$0xff]
      %v226 = vld [vmem:[%s1 + $0x18] sm:$0xff]
      %v227 = vld [vmem:[%s1 + $0x20] sm:$0xff]
      %v228 = vld [vmem:[%s1 + $0x28] sm:$0xff]
      %v229 = vld [vmem:[%s1 + $0x30] sm:$0xff]
      %v230 = vld [vmem:[%s1 + $0x38] sm:$0xff]
      %v231 = vld [vmem:[%s1 + $0x40] sm:$0xff]
      %v232 = vld [vmem:[%s1 + $0x48] sm:$0xff]
      %v233 = vld [vmem:[%s1 + $0x50] sm:$0xff]
      %v234 = vld [vmem:[%s1 + $0x58] sm:$0xff]
      %v235 = vld [vmem:[%s1 + $0x60] sm:$0xff]
      %v236 = vld [vmem:[%s1 + $0x68] sm:$0xff]
      %v237 = vld [vmem:[%s1 + $0x70] sm:$0xff]
      %v238 = vld [vmem:[%s1 + $0x78] sm:$0xff]
      %v255 = vunpack.c.l.b16 %v223
      %v256 = vunpack.c.h.b16 %v223
      %v257 = vunpack.c.l.b16 %v224
      %v258 = vunpack.c.h.b16 %v224
      %v259 = vunpack.c.l.b16 %v225
      %v260 = vunpack.c.h.b16 %v225
      %v261 = vunpack.c.l.b16 %v226
      %v262 = vunpack.c.h.b16 %v226
      %v263 = vunpack.c.l.b16 %v227
      %v264 = vunpack.c.h.b16 %v227
      %v265 = vunpack.c.l.b16 %v228
      %v266 = vunpack.c.h.b16 %v228
      %v267 = vunpack.c.l.b16 %v229
      %v268 = vunpack.c.h.b16 %v229
      %v269 = vunpack.c.l.b16 %v230
      %v270 = vunpack.c.h.b16 %v230
      %v271 = vunpack.c.l.b16 %v231
      %v272 = vunpack.c.h.b16 %v231
      %v273 = vunpack.c.l.b16 %v232
      %v274 = vunpack.c.h.b16 %v232
      %v275 = vunpack.c.l.b16 %v233
      %v276 = vunpack.c.h.b16 %v233
      %v277 = vunpack.c.l.b16 %v234
      %v278 = vunpack.c.h.b16 %v234
      %v279 = vunpack.c.l.b16 %v235
      %v280 = vunpack.c.h.b16 %v235
      %v281 = vunpack.c.l.b16 %v236
      %v282 = vunpack.c.h.b16 %v236
      %v283 = vunpack.c.l.b16 %v237
      %v284 = vunpack.c.h.b16 %v237
      %v285 = vunpack.c.l.b16 %v238
      %v286 = vunpack.c.h.b16 %v238
      %v287 = vpack.c.b16 %v257, %v255
      %v288 = vpack.c.b16 %v258, %v256
      %v289 = vpack.c.b16 %v261, %v259
      %v290 = vpack.c.b16 %v262, %v260
      %v291 = vpack.c.b16 %v265, %v263
      %v292 = vpack.c.b16 %v266, %v264
      %v293 = vpack.c.b16 %v269, %v267
      %v294 = vpack.c.b16 %v270, %v268
      %v295 = vpack.c.b16 %v273, %v271
      %v296 = vpack.c.b16 %v274, %v272
      %v297 = vpack.c.b16 %v277, %v275
      %v298 = vpack.c.b16 %v278, %v276
      %v299 = vpack.c.b16 %v281, %v279
      %v300 = vpack.c.b16 %v282, %v280
      %v301 = vpack.c.b16 %v285, %v283
      %v302 = vpack.c.b16 %v286, %v284
      %319 = vmatprep.subr.bf16.mxu0 %v288
      %320 = vmatpush1.bf16.msra.mxu0 %v287
      %321 = vmatprep.subr.bf16.mxu0 %v290
      %322 = vmatpush1.bf16.msra.mxu0 %v289
      %323 = vmatprep.subr.bf16.mxu0 %v292
      %324 = vmatpush1.bf16.msra.mxu0 %v291
      %325 = vmatprep.subr.bf16.mxu0 %v294
      %326 = vmatpush1.bf16.msra.mxu0 %v293
      %327 = vmatprep.subr.bf16.mxu0 %v296
      %328 = vmatpush1.bf16.msra.mxu0 %v295
      %329 = vmatprep.subr.bf16.mxu0 %v298
      %330 = vmatpush1.bf16.msra.mxu0 %v297
      %331 = vmatprep.subr.bf16.mxu0 %v300
      %332 = vmatpush1.bf16.msra.mxu0 %v299
      %333 = vmatprep.subr.bf16.mxu0 %v302
      %334 = vmatpush1.bf16.msra.mxu0 %v301
      %335 = vmatprep.subr.bf16.mxu0 0
      %336 = vmatpush1.bf16.msra.mxu0 0
      %337 = vmatprep.subr.bf16.mxu0 0
      %338 = vmatpush1.bf16.msra.mxu0 0
      %339 = vmatprep.subr.bf16.mxu0 0
      %340 = vmatpush1.bf16.msra.mxu0 0
      %341 = vmatprep.subr.bf16.mxu0 0
      %342 = vmatpush1.bf16.msra.mxu0 0
      %343 = vmatprep.subr.bf16.mxu0 0
      %344 = vmatpush1.bf16.msra.mxu0 0
      %345 = vmatprep.subr.bf16.mxu0 0
      %346 = vmatpush1.bf16.msra.mxu0 0
      %347 = vmatprep.subr.bf16.mxu0 0
      %348 = vmatpush1.bf16.msra.mxu0 0
      %349 = vmatprep.subr.bf16.mxu0 0
      %350 = vmatpush1.bf16.msra.mxu0 0
      %351 = vmatprep.mubr.bf16.mxu0 0
      %352 = vmatmul.mubr.bf16.gmra.mrb[0].mxu0 %v207
      %v353 = vpop.f32.mrb[0].mxu0
      %v354 = vadd.f32 0.0, %v353
      %v355 = vpop.f32.mrb[0].mxu0
      %v356 = vadd.f32 0.0, %v355
      %v357 = vpop.f32.mrb[0].mxu0
      %v358 = vadd.f32 0.0, %v357
      %v359 = vpop.f32.mrb[0].mxu0
      %v360 = vadd.f32 0.0, %v359
      %361 = vmatprep.mubr.bf16.mxu0 0
      %362 = vmatmul.mubr.bf16.gmra.mrb[0].mxu0 %v208
      %v363 = vpop.f32.mrb[0].mxu0
      %v364 = vadd.f32 0.0, %v363
      %v365 = vpop.f32.mrb[0].mxu0
      %v366 = vadd.f32 0.0, %v365
      %v367 = vpop.f32.mrb[0].mxu0
      %v368 = vadd.f32 0.0, %v367
      %v369 = vpop.f32.mrb[0].mxu0
      %v370 = vadd.f32 0.0, %v369
      %371 = vmatprep.mubr.bf16.mxu0 0
      %372 = vmatmul.mubr.bf16.gmra.mrb[0].mxu0 %v209
      %v373 = vpop.f32.mrb[0].mxu0
      %v374 = vadd.f32 0.0, %v373
      %v375 = vpop.f32.mrb[0].mxu0
      %v376 = vadd.f32 0.0, %v375
      %v377 = vpop.f32.mrb[0].mxu0
      %v378 = vadd.f32 0.0, %v377
      %v379 = vpop.f32.mrb[0].mxu0
      %v380 = vadd.f32 0.0, %v379
      %381 = vmatprep.mubr.bf16.mxu0 0
      %382 = vmatmul.mubr.bf16.gmra.mrb[0].mxu0 %v210
      %v383 = vpop.f32.mrb[0].mxu0
      %v384 = vadd.f32 0.0, %v383
      %v385 = vpop.f32.mrb[0].mxu0
      %v386 = vadd.f32 0.0, %v385
      %v387 = vpop.f32.mrb[0].mxu0
      %v388 = vadd.f32 0.0, %v387
      %v389 = vpop.f32.mrb[0].mxu0
      %v390 = vadd.f32 0.0, %v389
      %391 = vmatprep.mubr.bf16.mxu0 0
      %392 = vmatmul.mubr.bf16.gmra.mrb[0].mxu0 %v211
      %v393 = vpop.f32.mrb[0].mxu0
      %v394 = vadd.f32 0.0, %v393
      %v395 = vpop.f32.mrb[0].mxu0
      %v396 = vadd.f32 0.0, %v395
      %v397 = vpop.f32.mrb[0].mxu0
      %v398 = vadd.f32 0.0, %v397
      %v399 = vpop.f32.mrb[0].mxu0
      %v400 = vadd.f32 0.0, %v399
      %401 = vmatprep.mubr.bf16.mxu0 0
      %402 = vmatmul.mubr.bf16.gmra.mrb[0].mxu0 %v212
      %v403 = vpop.f32.mrb[0].mxu0
      %v404 = vadd.f32 0.0, %v403
      %v405 = vpop.f32.mrb[0].mxu0
      %v406 = vadd.f32 0.0, %v405
      %v407 = vpop.f32.mrb[0].mxu0
      %v408 = vadd.f32 0.0, %v407
      %v409 = vpop.f32.mrb[0].mxu0
      %v410 = vadd.f32 0.0, %v409
      %411 = vmatprep.mubr.bf16.mxu0 0
      %412 = vmatmul.mubr.bf16.gmra.mrb[0].mxu0 %v213
      %v413 = vpop.f32.mrb[0].mxu0
      %v414 = vadd.f32 0.0, %v413
      %v415 = vpop.f32.mrb[0].mxu0
      %v416 = vadd.f32 0.0, %v415
      %v417 = vpop.f32.mrb[0].mxu0
      %v418 = vadd.f32 0.0, %v417
      %v419 = vpop.f32.mrb[0].mxu0
      %v420 = vadd.f32 0.0, %v419
      %421 = vmatprep.mubr.bf16.mxu0 0
      %422 = vmatmul.mubr.bf16.gmra.mrb[0].mxu0 %v214
      %v423 = vpop.f32.mrb[0].mxu0
      %v424 = vadd.f32 0.0, %v423
      %v425 = vpop.f32.mrb[0].mxu0
      %v426 = vadd.f32 0.0, %v425
      %v427 = vpop.f32.mrb[0].mxu0
      %v428 = vadd.f32 0.0, %v427
      %v429 = vpop.f32.mrb[0].mxu0
      %v430 = vadd.f32 0.0, %v429
      %431 = vmatprep.mubr.bf16.mxu0 0
      %432 = vmatmul.mubr.bf16.gmra.mrb[0].mxu0 %v215
      %v433 = vpop.f32.mrb[0].mxu0
      %v434 = vadd.f32 0.0, %v433
      %v435 = vpop.f32.mrb[0].mxu0
      %v436 = vadd.f32 0.0, %v435
      %v437 = vpop.f32.mrb[0].mxu0
      %v438 = vadd.f32 0.0, %v437
      %v439 = vpop.f32.mrb[0].mxu0
      %v440 = vadd.f32 0.0, %v439
      %441 = vmatprep.mubr.bf16.mxu0 0
      %442 = vmatmul.mubr.bf16.gmra.mrb[0].mxu0 %v216
      %v443 = vpop.f32.mrb[0].mxu0
      %v444 = vadd.f32 0.0, %v443
      %v445 = vpop.f32.mrb[0].mxu0
      %v446 = vadd.f32 0.0, %v445
      %v447 = vpop.f32.mrb[0].mxu0
      %v448 = vadd.f32 0.0, %v447
      %v449 = vpop.f32.mrb[0].mxu0
      %v450 = vadd.f32 0.0, %v449
      %451 = vmatprep.mubr.bf16.mxu0 0
      %452 = vmatmul.mubr.bf16.gmra.mrb[0].mxu0 %v217
      %v453 = vpop.f32.mrb[0].mxu0
      %v454 = vadd.f32 0.0, %v453
      %v455 = vpop.f32.mrb[0].mxu0
      %v456 = vadd.f32 0.0, %v455
      %v457 = vpop.f32.mrb[0].mxu0
      %v458 = vadd.f32 0.0, %v457
      %v459 = vpop.f32.mrb[0].mxu0
      %v460 = vadd.f32 0.0, %v459
      %461 = vmatprep.mubr.bf16.mxu0 0
      %462 = vmatmul.mubr.bf16.gmra.mrb[0].mxu0 %v218
      %v463 = vpop.f32.mrb[0].mxu0
      %v464 = vadd.f32 0.0, %v463
      %v465 = vpop.f32.mrb[0].mxu0
      %v466 = vadd.f32 0.0, %v465
      %v467 = vpop.f32.mrb[0].mxu0
      %v468 = vadd.f32 0.0, %v467
      %v469 = vpop.f32.mrb[0].mxu0
      %v470 = vadd.f32 0.0, %v469
      %471 = vmatprep.mubr.bf16.mxu0 0
      %472 = vmatmul.mubr.bf16.gmra.mrb[0].mxu0 %v219
      %v473 = vpop.f32.mrb[0].mxu0
      %v474 = vadd.f32 0.0, %v473
      %v475 = vpop.f32.mrb[0].mxu0
      %v476 = vadd.f32 0.0, %v475
      %v477 = vpop.f32.mrb[0].mxu0
      %v478 = vadd.f32 0.0, %v477
      %v479 = vpop.f32.mrb[0].mxu0
      %v480 = vadd.f32 0.0, %v479
      %481 = vmatprep.mubr.bf16.mxu0 0
      %482 = vmatmul.mubr.bf16.gmra.mrb[0].mxu0 %v220
      %v483 = vpop.f32.mrb[0].mxu0
      %v484 = vadd.f32 0.0, %v483
      %v485 = vpop.f32.mrb[0].mxu0
      %v486 = vadd.f32 0.0, %v485
      %v487 = vpop.f32.mrb[0].mxu0
      %v488 = vadd.f32 0.0, %v487
      %v489 = vpop.f32.mrb[0].mxu0
      %v490 = vadd.f32 0.0, %v489
      %491 = vmatprep.mubr.bf16.mxu0 0
      %492 = vmatmul.mubr.bf16.gmra.mrb[0].mxu0 %v221
      %v493 = vpop.f32.mrb[0].mxu0
      %v494 = vadd.f32 0.0, %v493
      %v495 = vpop.f32.mrb[0].mxu0
      %v496 = vadd.f32 0.0, %v495
      %v497 = vpop.f32.mrb[0].mxu0
      %v498 = vadd.f32 0.0, %v497
      %v499 = vpop.f32.mrb[0].mxu0
      %v500 = vadd.f32 0.0, %v499
      %501 = vmatprep.mubr.bf16.mxu0 0
      %502 = vmatmul.mubr.bf16.gmra.mrb[0].mxu0 %v222
      %v503 = vpop.f32.mrb[0].mxu0
      %v504 = vadd.f32 0.0, %v503
      %v505 = vpop.f32.mrb[0].mxu0
      %v506 = vadd.f32 0.0, %v505
      %v507 = vpop.f32.mrb[0].mxu0
      %v508 = vadd.f32 0.0, %v507
      %v509 = vpop.f32.mrb[0].mxu0
      %v510 = vadd.f32 0.0, %v509
      %511 = vdwg.mxu0
      %v512 = vld [vmem:[%s2] sm:$0x3]
      %v514 = vlaneseq
      %v515 = vshrl.u32 %v514, 7
      %v516 = vsub.s32 0, %v515
      %v517 = vrot.slane %v512, %v516
      %v518 = vlaneseq
      %v519 = vshrl.u32 %v518, 7
      %v520 = vsub.s32 1, %v519
      %v521 = vrot.slane %v512, %v520
      %v524 = vadd.f32 %v517, %v354
      %v525 = vadd.f32 %v521, %v356
      %v526 = vadd.f32 %v517, %v358
      %v527 = vadd.f32 %v521, %v360
      %v528 = vadd.f32 %v517, %v364
      %v529 = vadd.f32 %v521, %v366
      %v530 = vadd.f32 %v517, %v368
      %v531 = vadd.f32 %v521, %v370
      %v532 = vadd.f32 %v517, %v374
      %v533 = vadd.f32 %v521, %v376
      %v534 = vadd.f32 %v517, %v378
      %v535 = vadd.f32 %v521, %v380
      %v536 = vadd.f32 %v517, %v384
      %v537 = vadd.f32 %v521, %v386
      %v538 = vadd.f32 %v517, %v388
      %v539 = vadd.f32 %v521, %v390
      %v540 = vadd.f32 %v517, %v394
      %v541 = vadd.f32 %v521, %v396
      %v542 = vadd.f32 %v517, %v398
      %v543 = vadd.f32 %v521, %v400
      %v544 = vadd.f32 %v517, %v404
      %v545 = vadd.f32 %v521, %v406
      %v546 = vadd.f32 %v517, %v408
      %v547 = vadd.f32 %v521, %v410
      %v548 = vadd.f32 %v517, %v414
      %v549 = vadd.f32 %v521, %v416
      %v550 = vadd.f32 %v517, %v418
      %v551 = vadd.f32 %v521, %v420
      %v552 = vadd.f32 %v517, %v424
      %v553 = vadd.f32 %v521, %v426
      %v554 = vadd.f32 %v517, %v428
      %v555 = vadd.f32 %v521, %v430
      %v556 = vadd.f32 %v517, %v434
      %v557 = vadd.f32 %v521, %v436
      %v558 = vadd.f32 %v517, %v438
      %v559 = vadd.f32 %v521, %v440
      %v560 = vadd.f32 %v517, %v444
      %v561 = vadd.f32 %v521, %v446
      %v562 = vadd.f32 %v517, %v448
      %v563 = vadd.f32 %v521, %v450
      %v564 = vadd.f32 %v517, %v454
      %v565 = vadd.f32 %v521, %v456
      %v566 = vadd.f32 %v517, %v458
      %v567 = vadd.f32 %v521, %v460
      %v568 = vadd.f32 %v517, %v464
      %v569 = vadd.f32 %v521, %v466
      %v570 = vadd.f32 %v517, %v468
      %v571 = vadd.f32 %v521, %v470
      %v572 = vadd.f32 %v517, %v474
      %v573 = vadd.f32 %v521, %v476
      %v574 = vadd.f32 %v517, %v478
      %v575 = vadd.f32 %v521, %v480
      %v576 = vadd.f32 %v517, %v484
      %v577 = vadd.f32 %v521, %v486
      %v578 = vadd.f32 %v517, %v488
      %v579 = vadd.f32 %v521, %v490
      %v580 = vadd.f32 %v517, %v494
      %v581 = vadd.f32 %v521, %v496
      %v582 = vadd.f32 %v517, %v498
      %v583 = vadd.f32 %v521, %v500
      %v584 = vadd.f32 %v517, %v504
      %v585 = vadd.f32 %v521, %v506
      %v586 = vadd.f32 %v517, %v508
      %v587 = vadd.f32 %v521, %v510
      %v588 = vlaneseq
      %v589 = vand.u32 %v588, 127
      %v590 = vadd.s32 %v589, 128
      %vm591 = vcmp.le.f32.partialorder %v524, %v525
      %v592 = vsel %vm591, %v524, %v525
      %v593 = vsel %vm591, %v589, %v590
      %594 = vmin.index.xlane.f32.xlu0 %v592
      %v595 = vpop.xlane.xlu0 %594
      %596 = vset.pattern.permute.xlu0 %v595
      %597 = vperm.xlu0 %596, %v593
      %v598 = vpop.permute.xlu0 %597
      %vm599 = vcmp.le.f32.partialorder %v526, %v527
      %v600 = vsel %vm599, %v526, %v527
      %v601 = vsel %vm599, %v589, %v590
      %602 = vmin.index.xlane.f32.xlu0 %v600
      %v603 = vpop.xlane.xlu0 %602
      %604 = vset.pattern.permute.xlu0 %v603
      %605 = vperm.xlu0 %604, %v601
      %v606 = vpop.permute.xlu0 %605
      %vm607 = vcmp.le.f32.partialorder %v528, %v529
      %v608 = vsel %vm607, %v528, %v529
      %v609 = vsel %vm607, %v589, %v590
      %610 = vmin.index.xlane.f32.xlu0 %v608
      %v611 = vpop.xlane.xlu0 %610
      %612 = vset.pattern.permute.xlu0 %v611
      %613 = vperm.xlu0 %612, %v609
      %v614 = vpop.permute.xlu0 %613
      %vm615 = vcmp.le.f32.partialorder %v530, %v531
      %v616 = vsel %vm615, %v530, %v531
      %v617 = vsel %vm615, %v589, %v590
      %618 = vmin.index.xlane.f32.xlu0 %v616
      %v619 = vpop.xlane.xlu0 %618
      %620 = vset.pattern.permute.xlu0 %v619
      %621 = vperm.xlu0 %620, %v617
      %v622 = vpop.permute.xlu0 %621
      %vm623 = vcmp.le.f32.partialorder %v532, %v533
      %v624 = vsel %vm623, %v532, %v533
      %v625 = vsel %vm623, %v589, %v590
      %626 = vmin.index.xlane.f32.xlu0 %v624
      %v627 = vpop.xlane.xlu0 %626
      %628 = vset.pattern.permute.xlu0 %v627
      %629 = vperm.xlu0 %628, %v625
      %v630 = vpop.permute.xlu0 %629
      %vm631 = vcmp.le.f32.partialorder %v534, %v535
      %v632 = vsel %vm631, %v534, %v535
      %v633 = vsel %vm631, %v589, %v590
      %634 = vmin.index.xlane.f32.xlu0 %v632
      %v635 = vpop.xlane.xlu0 %634
      %636 = vset.pattern.permute.xlu0 %v635
      %637 = vperm.xlu0 %636, %v633
      %v638 = vpop.permute.xlu0 %637
      %vm639 = vcmp.le.f32.partialorder %v536, %v537
      %v640 = vsel %vm639, %v536, %v537
      %v641 = vsel %vm639, %v589, %v590
      %642 = vmin.index.xlane.f32.xlu0 %v640
      %v643 = vpop.xlane.xlu0 %642
      %644 = vset.pattern.permute.xlu0 %v643
      %645 = vperm.xlu0 %644, %v641
      %v646 = vpop.permute.xlu0 %645
      %vm647 = vcmp.le.f32.partialorder %v538, %v539
      %v648 = vsel %vm647, %v538, %v539
      %v649 = vsel %vm647, %v589, %v590
      %650 = vmin.index.xlane.f32.xlu0 %v648
      %v651 = vpop.xlane.xlu0 %650
      %652 = vset.pattern.permute.xlu0 %v651
      %653 = vperm.xlu0 %652, %v649
      %v654 = vpop.permute.xlu0 %653
      %vm655 = vcmp.le.f32.partialorder %v540, %v541
      %v656 = vsel %vm655, %v540, %v541
      %v657 = vsel %vm655, %v589, %v590
      %658 = vmin.index.xlane.f32.xlu0 %v656
      %v659 = vpop.xlane.xlu0 %658
      %660 = vset.pattern.permute.xlu0 %v659
      %661 = vperm.xlu0 %660, %v657
      %v662 = vpop.permute.xlu0 %661
      %vm663 = vcmp.le.f32.partialorder %v542, %v543
      %v664 = vsel %vm663, %v542, %v543
      %v665 = vsel %vm663, %v589, %v590
      %666 = vmin.index.xlane.f32.xlu0 %v664
      %v667 = vpop.xlane.xlu0 %666
      %668 = vset.pattern.permute.xlu0 %v667
      %669 = vperm.xlu0 %668, %v665
      %v670 = vpop.permute.xlu0 %669
      %vm671 = vcmp.le.f32.partialorder %v544, %v545
      %v672 = vsel %vm671, %v544, %v545
      %v673 = vsel %vm671, %v589, %v590
      %674 = vmin.index.xlane.f32.xlu0 %v672
      %v675 = vpop.xlane.xlu0 %674
      %676 = vset.pattern.permute.xlu0 %v675
      %677 = vperm.xlu0 %676, %v673
      %v678 = vpop.permute.xlu0 %677
      %vm679 = vcmp.le.f32.partialorder %v546, %v547
      %v680 = vsel %vm679, %v546, %v547
      %v681 = vsel %vm679, %v589, %v590
      %682 = vmin.index.xlane.f32.xlu0 %v680
      %v683 = vpop.xlane.xlu0 %682
      %684 = vset.pattern.permute.xlu0 %v683
      %685 = vperm.xlu0 %684, %v681
      %v686 = vpop.permute.xlu0 %685
      %vm687 = vcmp.le.f32.partialorder %v548, %v549
      %v688 = vsel %vm687, %v548, %v549
      %v689 = vsel %vm687, %v589, %v590
      %690 = vmin.index.xlane.f32.xlu0 %v688
      %v691 = vpop.xlane.xlu0 %690
      %692 = vset.pattern.permute.xlu0 %v691
      %693 = vperm.xlu0 %692, %v689
      %v694 = vpop.permute.xlu0 %693
      %vm695 = vcmp.le.f32.partialorder %v550, %v551
      %v696 = vsel %vm695, %v550, %v551
      %v697 = vsel %vm695, %v589, %v590
      %698 = vmin.index.xlane.f32.xlu0 %v696
      %v699 = vpop.xlane.xlu0 %698
      %700 = vset.pattern.permute.xlu0 %v699
      %701 = vperm.xlu0 %700, %v697
      %v702 = vpop.permute.xlu0 %701
      %vm703 = vcmp.le.f32.partialorder %v552, %v553
      %v704 = vsel %vm703, %v552, %v553
      %v705 = vsel %vm703, %v589, %v590
      %706 = vmin.index.xlane.f32.xlu0 %v704
      %v707 = vpop.xlane.xlu0 %706
      %708 = vset.pattern.permute.xlu0 %v707
      %709 = vperm.xlu0 %708, %v705
      %v710 = vpop.permute.xlu0 %709
      %vm711 = vcmp.le.f32.partialorder %v554, %v555
      %v712 = vsel %vm711, %v554, %v555
      %v713 = vsel %vm711, %v589, %v590
      %714 = vmin.index.xlane.f32.xlu0 %v712
      %v715 = vpop.xlane.xlu0 %714
      %716 = vset.pattern.permute.xlu0 %v715
      %717 = vperm.xlu0 %716, %v713
      %v718 = vpop.permute.xlu0 %717
      %vm719 = vcmp.le.f32.partialorder %v556, %v557
      %v720 = vsel %vm719, %v556, %v557
      %v721 = vsel %vm719, %v589, %v590
      %722 = vmin.index.xlane.f32.xlu0 %v720
      %v723 = vpop.xlane.xlu0 %722
      %724 = vset.pattern.permute.xlu0 %v723
      %725 = vperm.xlu0 %724, %v721
      %v726 = vpop.permute.xlu0 %725
      %vm727 = vcmp.le.f32.partialorder %v558, %v559
      %v728 = vsel %vm727, %v558, %v559
      %v729 = vsel %vm727, %v589, %v590
      %730 = vmin.index.xlane.f32.xlu0 %v728
      %v731 = vpop.xlane.xlu0 %730
      %732 = vset.pattern.permute.xlu0 %v731
      %733 = vperm.xlu0 %732, %v729
      %v734 = vpop.permute.xlu0 %733
      %vm735 = vcmp.le.f32.partialorder %v560, %v561
      %v736 = vsel %vm735, %v560, %v561
      %v737 = vsel %vm735, %v589, %v590
      %738 = vmin.index.xlane.f32.xlu0 %v736
      %v739 = vpop.xlane.xlu0 %738
      %740 = vset.pattern.permute.xlu0 %v739
      %741 = vperm.xlu0 %740, %v737
      %v742 = vpop.permute.xlu0 %741
      %vm743 = vcmp.le.f32.partialorder %v562, %v563
      %v744 = vsel %vm743, %v562, %v563
      %v745 = vsel %vm743, %v589, %v590
      %746 = vmin.index.xlane.f32.xlu0 %v744
      %v747 = vpop.xlane.xlu0 %746
      %748 = vset.pattern.permute.xlu0 %v747
      %749 = vperm.xlu0 %748, %v745
      %v750 = vpop.permute.xlu0 %749
      %vm751 = vcmp.le.f32.partialorder %v564, %v565
      %v752 = vsel %vm751, %v564, %v565
      %v753 = vsel %vm751, %v589, %v590
      %754 = vmin.index.xlane.f32.xlu0 %v752
      %v755 = vpop.xlane.xlu0 %754
      %756 = vset.pattern.permute.xlu0 %v755
      %757 = vperm.xlu0 %756, %v753
      %v758 = vpop.permute.xlu0 %757
      %vm759 = vcmp.le.f32.partialorder %v566, %v567
      %v760 = vsel %vm759, %v566, %v567
      %v761 = vsel %vm759, %v589, %v590
      %762 = vmin.index.xlane.f32.xlu0 %v760
      %v763 = vpop.xlane.xlu0 %762
      %764 = vset.pattern.permute.xlu0 %v763
      %765 = vperm.xlu0 %764, %v761
      %v766 = vpop.permute.xlu0 %765
      %vm767 = vcmp.le.f32.partialorder %v568, %v569
      %v768 = vsel %vm767, %v568, %v569
      %v769 = vsel %vm767, %v589, %v590
      %770 = vmin.index.xlane.f32.xlu0 %v768
      %v771 = vpop.xlane.xlu0 %770
      %772 = vset.pattern.permute.xlu0 %v771
      %773 = vperm.xlu0 %772, %v769
      %v774 = vpop.permute.xlu0 %773
      %vm775 = vcmp.le.f32.partialorder %v570, %v571
      %v776 = vsel %vm775, %v570, %v571
      %v777 = vsel %vm775, %v589, %v590
      %778 = vmin.index.xlane.f32.xlu0 %v776
      %v779 = vpop.xlane.xlu0 %778
      %780 = vset.pattern.permute.xlu0 %v779
      %781 = vperm.xlu0 %780, %v777
      %v782 = vpop.permute.xlu0 %781
      %vm783 = vcmp.le.f32.partialorder %v572, %v573
      %v784 = vsel %vm783, %v572, %v573
      %v785 = vsel %vm783, %v589, %v590
      %786 = vmin.index.xlane.f32.xlu0 %v784
      %v787 = vpop.xlane.xlu0 %786
      %788 = vset.pattern.permute.xlu0 %v787
      %789 = vperm.xlu0 %788, %v785
      %v790 = vpop.permute.xlu0 %789
      %vm791 = vcmp.le.f32.partialorder %v574, %v575
      %v792 = vsel %vm791, %v574, %v575
      %v793 = vsel %vm791, %v589, %v590
      %794 = vmin.index.xlane.f32.xlu0 %v792
      %v795 = vpop.xlane.xlu0 %794
      %796 = vset.pattern.permute.xlu0 %v795
      %797 = vperm.xlu0 %796, %v793
      %v798 = vpop.permute.xlu0 %797
      %vm799 = vcmp.le.f32.partialorder %v576, %v577
      %v800 = vsel %vm799, %v576, %v577
      %v801 = vsel %vm799, %v589, %v590
      %802 = vmin.index.xlane.f32.xlu0 %v800
      %v803 = vpop.xlane.xlu0 %802
      %804 = vset.pattern.permute.xlu0 %v803
      %805 = vperm.xlu0 %804, %v801
      %v806 = vpop.permute.xlu0 %805
      %vm807 = vcmp.le.f32.partialorder %v578, %v579
      %v808 = vsel %vm807, %v578, %v579
      %v809 = vsel %vm807, %v589, %v590
      %810 = vmin.index.xlane.f32.xlu0 %v808
      %v811 = vpop.xlane.xlu0 %810
      %812 = vset.pattern.permute.xlu0 %v811
      %813 = vperm.xlu0 %812, %v809
      %v814 = vpop.permute.xlu0 %813
      %vm815 = vcmp.le.f32.partialorder %v580, %v581
      %v816 = vsel %vm815, %v580, %v581
      %v817 = vsel %vm815, %v589, %v590
      %818 = vmin.index.xlane.f32.xlu0 %v816
      %v819 = vpop.xlane.xlu0 %818
      %820 = vset.pattern.permute.xlu0 %v819
      %821 = vperm.xlu0 %820, %v817
      %v822 = vpop.permute.xlu0 %821
      %vm823 = vcmp.le.f32.partialorder %v582, %v583
      %v824 = vsel %vm823, %v582, %v583
      %v825 = vsel %vm823, %v589, %v590
      %826 = vmin.index.xlane.f32.xlu0 %v824
      %v827 = vpop.xlane.xlu0 %826
      %828 = vset.pattern.permute.xlu0 %v827
      %829 = vperm.xlu0 %828, %v825
      %v830 = vpop.permute.xlu0 %829
      %vm831 = vcmp.le.f32.partialorder %v584, %v585
      %v832 = vsel %vm831, %v584, %v585
      %v833 = vsel %vm831, %v589, %v590
      %834 = vmin.index.xlane.f32.xlu0 %v832
      %v835 = vpop.xlane.xlu0 %834
      %836 = vset.pattern.permute.xlu0 %v835
      %837 = vperm.xlu0 %836, %v833
      %v838 = vpop.permute.xlu0 %837
      %vm839 = vcmp.le.f32.partialorder %v586, %v587
      %v840 = vsel %vm839, %v586, %v587
      %v841 = vsel %vm839, %v589, %v590
      %842 = vmin.index.xlane.f32.xlu0 %v840
      %v843 = vpop.xlane.xlu0 %842
      %844 = vset.pattern.permute.xlu0 %v843
      %845 = vperm.xlu0 %844, %v841
      %v846 = vpop.permute.xlu0 %845
      %vm847 = vcmask 7168
      %848 = vst.msk [vmem:[%s172] sm:$0xff] %vm847, %v598
      %849 = vst.msk [vmem:[%s172 + $0x8] sm:$0xff] %vm847, %v606
      %850 = vst.msk [vmem:[%s172 + $0x10] sm:$0xff] %vm847, %v614
      %851 = vst.msk [vmem:[%s172 + $0x18] sm:$0xff] %vm847, %v622
      %852 = vst.msk [vmem:[%s172 + $0x20] sm:$0xff] %vm847, %v630
      %853 = vst.msk [vmem:[%s172 + $0x28] sm:$0xff] %vm847, %v638
      %854 = vst.msk [vmem:[%s172 + $0x30] sm:$0xff] %vm847, %v646
      %855 = vst.msk [vmem:[%s172 + $0x38] sm:$0xff] %vm847, %v654
      %856 = vst.msk [vmem:[%s172 + $0x40] sm:$0xff] %vm847, %v662
      %857 = vst.msk [vmem:[%s172 + $0x48] sm:$0xff] %vm847, %v670
      %858 = vst.msk [vmem:[%s172 + $0x50] sm:$0xff] %vm847, %v678
      %859 = vst.msk [vmem:[%s172 + $0x58] sm:$0xff] %vm847, %v686
      %860 = vst.msk [vmem:[%s172 + $0x60] sm:$0xff] %vm847, %v694
      %861 = vst.msk [vmem:[%s172 + $0x68] sm:$0xff] %vm847, %v702
      %862 = vst.msk [vmem:[%s172 + $0x70] sm:$0xff] %vm847, %v710
      %863 = vst.msk [vmem:[%s172 + $0x78] sm:$0xff] %vm847, %v718
      %864 = vst.msk [vmem:[%s172 + $0x80] sm:$0xff] %vm847, %v726
      %865 = vst.msk [vmem:[%s172 + $0x88] sm:$0xff] %vm847, %v734
      %866 = vst.msk [vmem:[%s172 + $0x90] sm:$0xff] %vm847, %v742
      %867 = vst.msk [vmem:[%s172 + $0x98] sm:$0xff] %vm847, %v750
      %868 = vst.msk [vmem:[%s172 + $0xa0] sm:$0xff] %vm847, %v758
      %869 = vst.msk [vmem:[%s172 + $0xa8] sm:$0xff] %vm847, %v766
      %870 = vst.msk [vmem:[%s172 + $0xb0] sm:$0xff] %vm847, %v774
      %871 = vst.msk [vmem:[%s172 + $0xb8] sm:$0xff] %vm847, %v782
      %872 = vst.msk [vmem:[%s172 + $0xc0] sm:$0xff] %vm847, %v790
      %873 = vst.msk [vmem:[%s172 + $0xc8] sm:$0xff] %vm847, %v798
      %874 = vst.msk [vmem:[%s172 + $0xd0] sm:$0xff] %vm847, %v806
      %875 = vst.msk [vmem:[%s172 + $0xd8] sm:$0xff] %vm847, %v814
      %876 = vst.msk [vmem:[%s172 + $0xe0] sm:$0xff] %vm847, %v822
      %877 = vst.msk [vmem:[%s172 + $0xe8] sm:$0xff] %vm847, %v830
      %878 = vst.msk [vmem:[%s172 + $0xf0] sm:$0xff] %vm847, %v838
      %879 = vst.msk [vmem:[%s172 + $0xf8] sm:$0xff] %vm847, %v846
      %s880 = smul.u32 32, %s14
      %p881 = scmp.lt.s32.totalorder %s880, 63
      %s882 = scalar_select %p881, %s880, 63
      %s883 = smul.addr %s882, 8
      %s884 = scalar_lea.vmem %s3, %s883
      // Predicated region
      $region33: #{pqr_quantize.1} parent=31 // pred_check
        %p885 = pneg %p100
      $region34: #{pqr_quantize.1} parent=31 // pred_check_branch
        %887 = sbr.rel (%p885) target = $region36
      $region35: #{pqr_quantize.1} parent=31 // pred_region
        %s888 = smul.u32 32, %s14
      $region36: #{pqr_quantize.1} parent=31 // pred_fallthru
        _
    $region32: #{pqr_quantize.1} parent=5 // pred_fallthru
      _
    %p889 = scmp.le.s32.totalorder 2, %s9
    // Predicated region
    $region37: #{pqr_quantize.1} parent=5 // pred_check
      %p890 = pneg %p889
    $region38: #{pqr_quantize.1} parent=5 // pred_check_branch
      %892 = sbr.rel (%p890) target = $region40
    $region39: #{pqr_quantize.1} parent=5 // pred_region
      %s893 = ssub.s32 %s9, 2
      // Predicated region
      $region41: #{pqr_quantize.1} parent=39 // pred_check
        %p894 = pneg %p106
      $region42: #{pqr_quantize.1} parent=39 // pred_check_branch
        %896 = sbr.rel (%p894) target = $region44
      $region43: #{pqr_quantize.1} parent=39 // pred_region
        %s897 = smul.u32 32, %s15
        %p898 = scmp.lt.s32.totalorder %s897, 63
        %s899 = scalar_select %p898, %s897, 63
        %s900 = smul.addr %s899, 8
        %s901 = scalar_lea.vmem %s3, %s900
      $region44: #{pqr_quantize.1} parent=39 // pred_fallthru
        _
    $region40: #{pqr_quantize.1} parent=5 // pred_fallthru
      _
  $region6: #{pqr_quantize.1} parent=0 // loop_footer
    %s13 = sadd.s32 1, %s9
  $region7: #{pqr_quantize.1} parent=0 // loop_footer_branch
    %8 = sbr.rel target = $region3
  $region8: #{pqr_quantize.1} parent=0 // loop_exit
    _

</llo_original>
